<compile_context>
chip_gen: v6e
topology: v6e:2x2x1
jax: 0.10.0
libtpu: 0.0.40
codegen_flags: <defaults>
</compile_context>

<pallas_src>
import functools

import jax
import jax.numpy as jnp
from jax import lax
from jax.experimental import pallas as pl
from jax.experimental.pallas import tpu as pltpu

_LANES = 128  # pad the output class dim to a multiple of this (lane-dense store)


def _round_up(x, m):
    return (x + m - 1) // m * m


def _mlp_kernel(x_ref, w1_ref, b1_ref, w2_ref, b2_ref, w3_ref, b3_ref,
                seed_ref, o_ref, *, dropout_p, training, num_classes):
    x = x_ref[...]  # (TILE_B, num_inputs), bf16

    # Linear(num_inputs, 5) + ReLU  (bf16 x bf16 -> f32 accumulate)
    h1 = jnp.dot(x, w1_ref[...], preferred_element_type=jnp.float32) + b1_ref[...]
    h1 = jnp.maximum(h1, 0.0)

    # Linear(5, 20) + ReLU
    h2 = jnp.dot(h1, w2_ref[...], preferred_element_type=jnp.float32) + b2_ref[...]
    h2 = jnp.maximum(h2, 0.0)

    # Linear(20, num_classes)
    logits = jnp.dot(h2, w3_ref[...], preferred_element_type=jnp.float32) + b3_ref[...]

    tile_b = logits.shape[0]

    # Dropout(p) -- PyTorch train-mode semantics: zero w.p. p, scale by 1/(1-p).
    # Stateless murmur-style hash of the global element index + seed.
    # TODO(synk): cannot bit-match PyTorch's RNG stream (different generator).
    if training and dropout_p > 0.0:
        row = lax.broadcasted_iota(jnp.int32, (tile_b, num_classes), 0)
        col = lax.broadcasted_iota(jnp.int32, (tile_b, num_classes), 1)
        gidx = (pl.program_id(0) * tile_b + row) * num_classes + col  # int32
        seed_u = lax.convert_element_type(seed_ref[0], jnp.uint32)
        h = gidx.astype(jnp.uint32) + seed_u * jnp.uint32(0x9E3779B9)
        # murmur3 fmix32 finalizer
        h = h ^ (h >> jnp.uint32(16))
        h = h * jnp.uint32(0x85EBCA6B)
        h = h ^ (h >> jnp.uint32(13))
        h = h * jnp.uint32(0xC2B2AE35)
        h = h ^ (h >> jnp.uint32(16))
        # integer threshold compare: keep with probability (1 - p)
        thresh = jnp.uint32(int(float(dropout_p) * float(1 << 24)))
        keep = (h >> jnp.uint32(8)) >= thresh
        logits = jnp.where(keep, logits * (1.0 / (1.0 - dropout_p)), 0.0)
        # NOTE: a row where every class is dropped yields all-zero logits and a
        # uniform softmax -- this matches PyTorch semantics; do not "fix".

    # Softmax over dim=1 (numerically stable)
    m = jnp.max(logits, axis=1, keepdims=True)
    e = jnp.exp(logits - m)
    denom = jnp.sum(e, axis=1, keepdims=True)
    probs = e / denom

    # Lane-dense writeback: pad the class dim up to the full 128-lane block.
    pad = o_ref.shape[1] - num_classes
    if pad > 0:
        probs = jnp.concatenate(
            [probs, jnp.zeros((tile_b, pad), dtype=probs.dtype)], axis=1)
    o_ref[...] = probs


def my_module_forward(x, params, seed, *, dropout_p=0.3, training=True,
                      tile_b=1024):
    """Full MLP forward in a single batch-tiled, pipelined Pallas kernel."""
    B, num_inputs = x.shape
    num_classes = params["w3"].shape[1]
    n_pad = _round_up(num_classes, _LANES)

    # Batch tile: multiple of 8 sublanes, capped at `tile_b` rows.
    tb = max(8, min(int(tile_b), _round_up(B, 8)))
    tb = _round_up(tb, 8)
    b_pad = _round_up(B, tb)
    grid = (b_pad // tb,)

    # bf16 for x's HBM traffic (dominant DMA); pad batch to a tile multiple.
    x_in = x.astype(jnp.bfloat16)
    if b_pad != B:
        x_in = jnp.pad(x_in, ((0, b_pad - B), (0, 0)))
    w1 = params["w1"].astype(jnp.bfloat16)

    kernel = functools.partial(
        _mlp_kernel,
        dropout_p=float(dropout_p),
        training=bool(training),
        num_classes=int(num_classes))

    const2d = lambda i: (0, 0)  # weights/biases: VMEM-resident across the grid
    out_padded = pl.pallas_call(
        kernel,
        out_shape=jax.ShapeDtypeStruct((b_pad, n_pad), jnp.float32),
        grid=grid,
        in_specs=[
            pl.BlockSpec((tb, num_inputs), lambda i: (i, 0)),      # x: batch-tiled
            pl.BlockSpec(params["w1"].shape, const2d),             # w1
            pl.BlockSpec(params["b1"].shape, const2d),             # b1
            pl.BlockSpec(params["w2"].shape, const2d),             # w2
            pl.BlockSpec(params["b2"].shape, const2d),             # b2
            pl.BlockSpec(params["w3"].shape, const2d),             # w3
            pl.BlockSpec(params["b3"].shape, const2d),             # b3
            pl.BlockSpec(memory_space=pltpu.MemorySpace.SMEM),     # seed scalar
        ],
        out_specs=pl.BlockSpec((tb, n_pad), lambda i: (i, 0)),
        compiler_params=pltpu.CompilerParams(
            dimension_semantics=("parallel",)),
    )(x_in,
      w1, params["b1"],
      params["w2"], params["b2"],
      params["w3"], params["b3"],
      jnp.asarray([seed], dtype=jnp.int32))

    return out_padded[:B, :num_classes]


def init_params(key, num_inputs, num_classes):
    """Deterministic parameter init (PyTorch Linear weights pre-transposed to (in, out))."""
    ks = jax.random.split(key, 6)
    w1 = jax.random.normal(ks[0], (num_inputs, 5), jnp.float32) * 0.1
    b1 = jax.random.normal(ks[1], (1, 5), jnp.float32) * 0.01
    w2 = jax.random.normal(ks[2], (5, 20), jnp.float32) * 0.1
    b2 = jax.random.normal(ks[3], (1, 20), jnp.float32) * 0.01
    w3 = jax.random.normal(ks[4], (20, num_classes), jnp.float32) * 0.1
    b3 = jax.random.normal(ks[5], (1, num_classes), jnp.float32) * 0.01
    return dict(w1=w1, b1=b1, w2=w2, b2=b2, w3=w3, b3=b3)


def _reference_eval(x, params):
    """Pure-JAX reference of the eval-mode (no-dropout) forward, same bf16 input cast."""
    xb = x.astype(jnp.bfloat16)
    w1 = params["w1"].astype(jnp.bfloat16)
    h1 = jnp.maximum(
        jnp.dot(xb, w1, preferred_element_type=jnp.float32) + params["b1"], 0.0)
    h2 = jnp.maximum(
        jnp.dot(h1, params["w2"], preferred_element_type=jnp.float32) + params["b2"], 0.0)
    logits = jnp.dot(h2, params["w3"], preferred_element_type=jnp.float32) + params["b3"]
    return jax.nn.softmax(logits, axis=1)


if __name__ == "__main__":
    key = jax.random.PRNGKey(0)
    k_x, k_params = jax.random.split(key)

    B, num_inputs, num_classes = 8, 32, 16
    x = jax.random.normal(k_x, (B, num_inputs), jnp.float32)
    params = init_params(k_params, num_inputs, num_classes)

    # Train-mode run (dropout active), as for a freshly constructed PyTorch module.
    out = my_module_forward(x, params, seed=42, dropout_p=0.3, training=True)
    out = jax.block_until_ready(out)

    assert out.shape == (B, num_classes)
    assert bool(jnp.all(jnp.isfinite(out)))
    # Softmax rows sum to 1 (softmax is applied after dropout, as in the module).
    assert bool(jnp.allclose(jnp.sum(out, axis=1), 1.0, atol=1e-5))

    # Eval-mode run checked against a pure-JAX reference (dropout is identity).
    out_eval = my_module_forward(x, params, seed=0, dropout_p=0.3, training=False)
    out_eval = jax.block_until_ready(out_eval)
    ref = _reference_eval(x, params)
    assert out_eval.shape == (B, num_classes)
    assert bool(jnp.allclose(out_eval, ref, atol=1e-2))

    print("KERNEL_OK")
</pallas_src>

<mosaic_0001>
module attributes {stable_mosaic.version = 11 : i64} {
  func.func @_mlp_kernel(%arg0: i32, %arg1: memref<8x32xbf16, #tpu.memory_space<vmem>>, %arg2: memref<32x5xbf16, #tpu.memory_space<vmem>>, %arg3: memref<1x5xf32, #tpu.memory_space<vmem>>, %arg4: memref<5x20xf32, #tpu.memory_space<vmem>>, %arg5: memref<1x20xf32, #tpu.memory_space<vmem>>, %arg6: memref<20x16xf32, #tpu.memory_space<vmem>>, %arg7: memref<1x16xf32, #tpu.memory_space<vmem>>, %arg8: memref<1xi32, #tpu.memory_space<smem>>, %arg9: memref<8x128xf32, #tpu.memory_space<vmem>>) attributes {dimension_semantics = [#tpu.dimension_semantics<parallel>], iteration_bounds = array<i64: 1>, scalar_prefetch = 0 : i64, scratch_operands = 0 : i64, tpu.core_type = #tpu.core_type<tc>, window_params = [{transform_indices = @transform_0, window_bounds = array<i64: 8, 32>}, {pipeline_mode = #tpu.pipeline_mode<synchronous>, transform_indices = @transform_1, window_bounds = array<i64: 32, 5>}, {pipeline_mode = #tpu.pipeline_mode<synchronous>, transform_indices = @transform_2, window_bounds = array<i64: 1, 5>}, {pipeline_mode = #tpu.pipeline_mode<synchronous>, transform_indices = @transform_3, window_bounds = array<i64: 5, 20>}, {pipeline_mode = #tpu.pipeline_mode<synchronous>, transform_indices = @transform_4, window_bounds = array<i64: 1, 20>}, {pipeline_mode = #tpu.pipeline_mode<synchronous>, transform_indices = @transform_5, window_bounds = array<i64: 20, 16>}, {pipeline_mode = #tpu.pipeline_mode<synchronous>, transform_indices = @transform_6, window_bounds = array<i64: 1, 16>}, {transform_indices = @transform_7, window_bounds = array<i64: 1>}, {transform_indices = @transform_8, window_bounds = array<i64: 8, 128>}]} {
    %c0 = arith.constant 0 : index
    %c0_0 = arith.constant 0 : index
    %0 = vector.load %arg1[%c0, %c0_0] : memref<8x32xbf16, #tpu.memory_space<vmem>>, vector<8x32xbf16>
    %c0_1 = arith.constant 0 : index
    %c0_2 = arith.constant 0 : index
    %1 = vector.load %arg2[%c0_1, %c0_2] : memref<32x5xbf16, #tpu.memory_space<vmem>>, vector<32x5xbf16>
    %cst = arith.constant dense<0.000000e+00> : vector<8x5xf32>
    %2 = tpu.matmul %0, %1, %cst {dimension_numbers = #tpu.dot_dimension_numbers<[1], [0], [0], [1], [0, 0, 1, 1], [], []>} : vector<8x32xbf16>, vector<32x5xbf16>, vector<8x5xf32> -> vector<8x5xf32>
    %c0_3 = arith.constant 0 : index
    %c0_4 = arith.constant 0 : index
    %3 = vector.load %arg3[%c0_3, %c0_4] : memref<1x5xf32, #tpu.memory_space<vmem>>, vector<1x5xf32>
    %4 = vector.broadcast %3 : vector<1x5xf32> to vector<8x5xf32>
    %5 = arith.addf %2, %4 : vector<8x5xf32>
    %cst_5 = arith.constant 0.000000e+00 : f32
    %6 = vector.broadcast %cst_5 : f32 to vector<8x5xf32>
    %7 = arith.maximumf %5, %6 : vector<8x5xf32>
    %c0_6 = arith.constant 0 : index
    %c0_7 = arith.constant 0 : index
    %8 = vector.load %arg4[%c0_6, %c0_7] : memref<5x20xf32, #tpu.memory_space<vmem>>, vector<5x20xf32>
    %cst_8 = arith.constant dense<0.000000e+00> : vector<8x20xf32>
    %9 = tpu.matmul %7, %8, %cst_8 {dimension_numbers = #tpu.dot_dimension_numbers<[1], [0], [0], [1], [0, 0, 1, 1], [], []>} : vector<8x5xf32>, vector<5x20xf32>, vector<8x20xf32> -> vector<8x20xf32>
    %c0_9 = arith.constant 0 : index
    %c0_10 = arith.constant 0 : index
    %10 = vector.load %arg5[%c0_9, %c0_10] : memref<1x20xf32, #tpu.memory_space<vmem>>, vector<1x20xf32>
    %11 = vector.broadcast %10 : vector<1x20xf32> to vector<8x20xf32>
    %12 = arith.addf %9, %11 : vector<8x20xf32>
    %cst_11 = arith.constant 0.000000e+00 : f32
    %13 = vector.broadcast %cst_11 : f32 to vector<8x20xf32>
    %14 = arith.maximumf %12, %13 : vector<8x20xf32>
    %c0_12 = arith.constant 0 : index
    %c0_13 = arith.constant 0 : index
    %15 = vector.load %arg6[%c0_12, %c0_13] : memref<20x16xf32, #tpu.memory_space<vmem>>, vector<20x16xf32>
    %cst_14 = arith.constant dense<0.000000e+00> : vector<8x16xf32>
    %16 = tpu.matmul %14, %15, %cst_14 {dimension_numbers = #tpu.dot_dimension_numbers<[1], [0], [0], [1], [0, 0, 1, 1], [], []>} : vector<8x20xf32>, vector<20x16xf32>, vector<8x16xf32> -> vector<8x16xf32>
    %c0_15 = arith.constant 0 : index
    %c0_16 = arith.constant 0 : index
    %17 = vector.load %arg7[%c0_15, %c0_16] : memref<1x16xf32, #tpu.memory_space<vmem>>, vector<1x16xf32>
    %18 = vector.broadcast %17 : vector<1x16xf32> to vector<8x16xf32>
    %19 = arith.addf %16, %18 : vector<8x16xf32>
    %20 = tpu.iota {dimensions = array<i32: 0>} : vector<8x16xi32>
    %21 = tpu.iota {dimensions = array<i32: 1>} : vector<8x16xi32>
    %c8_i32 = arith.constant 8 : i32
    %22 = arith.muli %arg0, %c8_i32 : i32
    %23 = vector.broadcast %22 : i32 to vector<8x16xi32>
    %24 = arith.addi %23, %20 : vector<8x16xi32>
    %c16_i32 = arith.constant 16 : i32
    %25 = vector.broadcast %c16_i32 : i32 to vector<8x16xi32>
    %26 = arith.muli %24, %25 : vector<8x16xi32>
    %27 = arith.addi %26, %21 : vector<8x16xi32>
    %c0_17 = arith.constant 0 : index
    %28 = memref.load %arg8[%c0_17] : memref<1xi32, #tpu.memory_space<smem>>
    %c-1640531527_i32 = arith.constant -1640531527 : i32
    %29 = arith.muli %28, %c-1640531527_i32 : i32
    %30 = vector.broadcast %29 : i32 to vector<8x16xi32>
    %31 = arith.addi %27, %30 : vector<8x16xi32>
    %c16_i32_18 = arith.constant 16 : i32
    %32 = vector.broadcast %c16_i32_18 : i32 to vector<8x16xi32>
    %33 = arith.shrui %31, %32 : vector<8x16xi32>
    %34 = arith.xori %31, %33 : vector<8x16xi32>
    %c-2048144789_i32 = arith.constant -2048144789 : i32
    %35 = vector.broadcast %c-2048144789_i32 : i32 to vector<8x16xi32>
    %36 = arith.muli %34, %35 : vector<8x16xi32>
    %c13_i32 = arith.constant 13 : i32
    %37 = vector.broadcast %c13_i32 : i32 to vector<8x16xi32>
    %38 = arith.shrui %36, %37 : vector<8x16xi32>
    %39 = arith.xori %36, %38 : vector<8x16xi32>
    %c-1028477387_i32 = arith.constant -1028477387 : i32
    %40 = vector.broadcast %c-1028477387_i32 : i32 to vector<8x16xi32>
    %41 = arith.muli %39, %40 : vector<8x16xi32>
    %c16_i32_19 = arith.constant 16 : i32
    %42 = vector.broadcast %c16_i32_19 : i32 to vector<8x16xi32>
    %43 = arith.shrui %41, %42 : vector<8x16xi32>
    %44 = arith.xori %41, %43 : vector<8x16xi32>
    %c8_i32_20 = arith.constant 8 : i32
    %45 = vector.broadcast %c8_i32_20 : i32 to vector<8x16xi32>
    %46 = arith.shrui %44, %45 : vector<8x16xi32>
    %c5033164_i32 = arith.constant 5033164 : i32
    %47 = vector.broadcast %c5033164_i32 : i32 to vector<8x16xi32>
    %48 = arith.cmpi uge, %46, %47 : vector<8x16xi32>
    %cst_21 = arith.constant 1.42857146 : f32
    %49 = vector.broadcast %cst_21 : f32 to vector<8x16xf32>
    %50 = arith.mulf %19, %49 : vector<8x16xf32>
    %cst_22 = arith.constant 0.000000e+00 : f32
    %51 = vector.broadcast %cst_22 : f32 to vector<8x16xf32>
    %52 = arith.select %48, %50, %51 : vector<8x16xi1>, vector<8x16xf32>
    %cst_23 = arith.constant dense<0xFF800000> : vector<8xf32>
    %53 = vector.multi_reduction <maximumf>, %52, %cst_23 [1] : vector<8x16xf32> to vector<8xf32>
    %54 = vector.shape_cast %53 : vector<8xf32> to vector<8x1xf32>
    %55 = vector.broadcast %54 : vector<8x1xf32> to vector<8x16xf32>
    %56 = arith.subf %52, %55 : vector<8x16xf32>
    %57 = math.exp %56 : vector<8x16xf32>
    %cst_24 = arith.constant dense<0.000000e+00> : vector<8xf32>
    %58 = vector.multi_reduction <add>, %57, %cst_24 [1] : vector<8x16xf32> to vector<8xf32>
    %59 = vector.shape_cast %58 : vector<8xf32> to vector<8x1xf32>
    %60 = vector.broadcast %59 : vector<8x1xf32> to vector<8x16xf32>
    %61 = arith.divf %57, %60 : vector<8x16xf32>
    %cst_25 = arith.constant 0.000000e+00 : f32
    %62 = vector.broadcast %cst_25 : f32 to vector<8x112xf32>
    %63 = tpu.concatenate %61, %62 in 1 : vector<8x16xf32>, vector<8x112xf32> -> vector<8x128xf32>
    %c0_26 = arith.constant 0 : index
    %c0_27 = arith.constant 0 : index
    %64 = vector.load %arg9[%c0_26, %c0_27] : memref<8x128xf32, #tpu.memory_space<vmem>>, vector<8x128xf32>
    tpu.vector_store %arg9[%c0_26, %c0_27], %63 {strides = array<i32>} : memref<8x128xf32, #tpu.memory_space<vmem>>, vector<8x128xf32>,
    return
  }
  func.func @transform_0(%arg0: i32) -> (i32, i32) {
    %c0_i32 = arith.constant 0 : i32
    %c0_i32_0 = arith.constant 0 : i32
    return %arg0, %c0_i32 : i32, i32
  }
  func.func @transform_1(%arg0: i32) -> (i32, i32) {
    %c0_i32 = arith.constant 0 : i32
    %c0_i32_0 = arith.constant 0 : i32
    %c0_i32_1 = arith.constant 0 : i32
    return %c0_i32, %c0_i32_0 : i32, i32
  }
  func.func @transform_2(%arg0: i32) -> (i32, i32) {
    %c0_i32 = arith.constant 0 : i32
    %c0_i32_0 = arith.constant 0 : i32
    %c0_i32_1 = arith.constant 0 : i32
    return %c0_i32, %c0_i32_0 : i32, i32
  }
  func.func @transform_3(%arg0: i32) -> (i32, i32) {
    %c0_i32 = arith.constant 0 : i32
    %c0_i32_0 = arith.constant 0 : i32
    %c0_i32_1 = arith.constant 0 : i32
    return %c0_i32, %c0_i32_0 : i32, i32
  }
  func.func @transform_4(%arg0: i32) -> (i32, i32) {
    %c0_i32 = arith.constant 0 : i32
    %c0_i32_0 = arith.constant 0 : i32
    %c0_i32_1 = arith.constant 0 : i32
    return %c0_i32, %c0_i32_0 : i32, i32
  }
  func.func @transform_5(%arg0: i32) -> (i32, i32) {
    %c0_i32 = arith.constant 0 : i32
    %c0_i32_0 = arith.constant 0 : i32
    %c0_i32_1 = arith.constant 0 : i32
    return %c0_i32, %c0_i32_0 : i32, i32
  }
  func.func @transform_6(%arg0: i32) -> (i32, i32) {
    %c0_i32 = arith.constant 0 : i32
    %c0_i32_0 = arith.constant 0 : i32
    %c0_i32_1 = arith.constant 0 : i32
    return %c0_i32, %c0_i32_0 : i32, i32
  }
  func.func @transform_7(%arg0: i32) -> i32 {
    %c0_i32 = arith.constant 0 : i32
    %c0_i32_0 = arith.constant 0 : i32
    return %c0_i32 : i32
  }
  func.func @transform_8(%arg0: i32) -> (i32, i32) {
    %c0_i32 = arith.constant 0 : i32
    %c0_i32_0 = arith.constant 0 : i32
    return %arg0, %c0_i32 : i32, i32
  }
}

</mosaic_0001>

<llo_original>
// kernel: tpu_custom_call.1
$region0: #{tpu_custom_call.1}
  #allocation0 [shape = 'u32[]', space=smem, size = 0x4, offset = 0x4, fixed_abs, tag = 'smem constant byte address 0x4 - core index']
  #allocation1 [shape = 'u32[144,128]{1,0:T(1,128)}', space=vmem, size = 0x12000, scoped, tag = 'internal scratch']
  #allocation2 [shape = 's32[1]{0:T(128)S(6)}', space=smem, size = 0x200, scoped, tag = 'scoped memory for tpu_custom_call.1']
  %s0 = inlined_call_operand.vmem [shape: bf16[8,32], index: 0, kind: input, shape index: {}]
  %s1 = inlined_call_operand.vmem [shape: bf16[32,5], index: 1, kind: input, shape index: {}]
  %s2 = inlined_call_operand.vmem [shape: f32[1,5], index: 2, kind: input, shape index: {}]
  %s3 = inlined_call_operand.vmem [shape: f32[5,20], index: 3, kind: input, shape index: {}]
  %s4 = inlined_call_operand.vmem [shape: f32[1,20], index: 4, kind: input, shape index: {}]
  %s5 = inlined_call_operand.vmem [shape: f32[20,16], index: 5, kind: input, shape index: {}]
  %s6 = inlined_call_operand.vmem [shape: f32[1,16], index: 6, kind: input, shape index: {}]
  %s7 = inlined_call_operand.<no memory space> [shape: s32[1], index: 7, kind: input, shape index: {}]
  %s8 = inlined_call_operand.hbm [shape: f32[8,128], index: 8, kind: output, shape index: {}]
  %s9 = sld [smem:[#allocation0]]
  $region42: #{tpu_custom_call.1} parent=0
    _
  %s11 = ssub.s32 1, %s9
  %s12 = scalar_select 0, %s11, %s9
  %13 = sst [smem:[#allocation2]] %s7
  $region1: #{tpu_custom_call.1} parent=0
    #allocation3 [shape = 'u8[4096]{0}', space=vmem, size = 0x1000, scoped, tag = 'output window, operand 0, single buffered']
    #allocation4 [shape = 's32[1]{0}', space=sflag, size = 0x4, scoped, tag = 'scoped memory for tpu_custom_call.1']
    %14 = vsyncpa [#allocation4], 0
    // Predicated region
    $region2: #{tpu_custom_call.1} parent=1 // pred_check
      _
    $region3: #{tpu_custom_call.1} parent=1 // pred_check_branch
      %16 = sbr.rel (0) target = $region5
    $region4: #{tpu_custom_call.1} parent=1 // pred_region
      _
    $region5: #{tpu_custom_call.1} parent=1 // pred_fallthru
      _
    // Predicated region
    $region6: #{tpu_custom_call.1} parent=1 // pred_check
      _
    $region7: #{tpu_custom_call.1} parent=1 // pred_check_branch
      %18 = sbr.rel (0) target = $region9
    $region8: #{tpu_custom_call.1} parent=1 // pred_region
      _
    $region9: #{tpu_custom_call.1} parent=1 // pred_fallthru
      _
    // Predicated region
    $region10: #{tpu_custom_call.1} parent=1 // pred_check
      _
    $region11: #{tpu_custom_call.1} parent=1 // pred_check_branch
      %20 = sbr.rel (0) target = $region13
    $region12: #{tpu_custom_call.1} parent=1 // pred_region
      _
    $region13: #{tpu_custom_call.1} parent=1 // pred_fallthru
      _
    // Predicated region
    $region14: #{tpu_custom_call.1} parent=1 // pred_check
      _
    $region15: #{tpu_custom_call.1} parent=1 // pred_check_branch
      %22 = sbr.rel (0) target = $region17
    $region16: #{tpu_custom_call.1} parent=1 // pred_region
      _
    $region17: #{tpu_custom_call.1} parent=1 // pred_fallthru
      _
    // Predicated region
    $region18: #{tpu_custom_call.1} parent=1 // pred_check
      _
    $region19: #{tpu_custom_call.1} parent=1 // pred_check_branch
      %24 = sbr.rel (0) target = $region21
    $region20: #{tpu_custom_call.1} parent=1 // pred_region
      _
    $region21: #{tpu_custom_call.1} parent=1 // pred_fallthru
      _
    // Predicated region
    $region22: #{tpu_custom_call.1} parent=1 // pred_check
      _
    $region23: #{tpu_custom_call.1} parent=1 // pred_check_branch
      %26 = sbr.rel (0) target = $region25
    $region24: #{tpu_custom_call.1} parent=1 // pred_region
      _
    $region25: #{tpu_custom_call.1} parent=1 // pred_fallthru
      _
    // Predicated region
    $region26: #{tpu_custom_call.1} parent=1 // pred_check
      _
    $region27: #{tpu_custom_call.1} parent=1 // pred_check_branch
      %28 = sbr.rel (0) target = $region29
    $region28: #{tpu_custom_call.1} parent=1 // pred_region
      _
    $region29: #{tpu_custom_call.1} parent=1 // pred_fallthru
      _
    // Predicated region
    $region30: #{tpu_custom_call.1} parent=1 // pred_check
      _
    $region31: #{tpu_custom_call.1} parent=1 // pred_check_branch
      %30 = sbr.rel (0) target = $region33
    $region32: #{tpu_custom_call.1} parent=1 // pred_region
      _
    $region33: #{tpu_custom_call.1} parent=1 // pred_fallthru
      _
    %v32 = vld [vmem:[%s0] sm:$0xf]
    %v33 = vld [vmem:[%s1] sm:$0xf]
    %v34 = vld [vmem:[%s1 + $0x4] sm:$0xf]
    %v35 = vld [vmem:[%s1 + $0x8] sm:$0xf]
    %v36 = vld [vmem:[%s1 + $0xc] sm:$0xf]
    %v37 = vld [vmem:[%s2] sm:$0x1]
    %v39 = vlaneseq
    %v40 = vshrl.u32 %v39, 7
    %v41 = vsub.s32 0, %v40
    %v42 = vrot.slane %v37, %v41
    %v48 = vunpack.c.l.b16 %v33
    %v49 = vunpack.c.l.b16 %v34
    %v50 = vunpack.c.l.b16 %v35
    %v51 = vunpack.c.l.b16 %v36
    %v52 = vpack.c.b16 %v49, %v48
    %v53 = vpack.c.b16 %v51, %v50
    %vm56 = vcmask 261120
    %v58 = vsel %vm56, %v32, 0
    %60 = vmatprep.subr.bf16.mxu0 0
    %61 = vmatpush1.bf16.msra.mxu0 0
    %62 = vmatprep.subr.bf16.mxu0 0
    %63 = vmatpush1.bf16.msra.mxu0 0
    %64 = vmatprep.subr.bf16.mxu0 0
    %65 = vmatpush1.bf16.msra.mxu0 0
    %66 = vmatprep.subr.bf16.mxu0 0
    %67 = vmatpush1.bf16.msra.mxu0 0
    %68 = vmatprep.subr.bf16.mxu0 0
    %69 = vmatpush1.bf16.msra.mxu0 0
    %70 = vmatprep.subr.bf16.mxu0 0
    %71 = vmatpush1.bf16.msra.mxu0 0
    %72 = vmatprep.subr.bf16.mxu0 0
    %73 = vmatpush1.bf16.msra.mxu0 %v53
    %74 = vmatprep.subr.bf16.mxu0 0
    %75 = vmatpush1.bf16.msra.mxu0 %v52
    %76 = vmatprep.subr.bf16.mxu0 0
    %77 = vmatpush2.bf16.msra.mxu0 0
    %78 = vmatprep.subr.bf16.mxu0 0
    %79 = vmatpush2.bf16.msra.mxu0 0
    %80 = vmatprep.subr.bf16.mxu0 0
    %81 = vmatpush2.bf16.msra.mxu0 0
    %82 = vmatprep.subr.bf16.mxu0 0
    %83 = vmatpush2.bf16.msra.mxu0 0
    %84 = vmatprep.subr.bf16.mxu0 0
    %85 = vmatpush2.bf16.msra.mxu0 0
    %86 = vmatprep.subr.bf16.mxu0 0
    %87 = vmatpush2.bf16.msra.mxu0 0
    %88 = vmatprep.subr.bf16.mxu0 0
    %89 = vmatpush2.bf16.msra.mxu0 0
    %90 = vmatprep.subr.bf16.mxu0 0
    %91 = vmatpush2.bf16.msra.mxu0 0
    %92 = vmatprep.mubr.bf16.mxu0 0
    %93 = vmatmul.mubr.bf16.gmra.mxu0 %v58
    %v94 = vpop.f32.mrf.mxu0
    %v95 = vadd.f32 %v42, %v94
    %v96 = vpop.f32.mrf.mxu0
    %v97 = vpop.f32.mrf.mxu0
    %v98 = vpop.f32.mrf.mxu0
    %99 = vdwg.mxu0
    %v100 = vmax.f32 %v95, 0.0
    %v101 = vld [vmem:[%s3] sm:$0x1f]
    %v102 = vld [vmem:[%s4] sm:$0x1]
    %v104 = vlaneseq
    %v105 = vshrl.u32 %v104, 7
    %v106 = vsub.s32 0, %v105
    %v107 = vrot.slane %v102, %v106
    %vm109 = vcmask 39936
    %v111 = vsel %vm109, %v100, 0
    %vm113 = vcmask 1044480
    %v115 = vsel %vm113, %v101, 0
    %117 = vmatprep.subr.mxu0 0.0
    %118 = vmatpush1.msra.mxu0 0.0
    %119 = vmatprep.subr.mxu0 0.0
    %120 = vmatpush1.msra.mxu0 0.0
    %121 = vmatprep.subr.mxu0 0.0
    %122 = vmatpush1.msra.mxu0 0.0
    %123 = vmatprep.subr.mxu0 0.0
    %124 = vmatpush1.msra.mxu0 0.0
    %125 = vmatprep.subr.mxu0 0.0
    %126 = vmatpush1.msra.mxu0 0.0
    %127 = vmatprep.subr.mxu0 0.0
    %128 = vmatpush1.msra.mxu0 0.0
    %129 = vmatprep.subr.mxu0 0.0
    %130 = vmatpush1.msra.mxu0 0.0
    %131 = vmatprep.subr.mxu0 0.0
    %132 = vmatpush1.msra.mxu0 0.0
    %133 = vmatprep.subr.mxu0 0.0
    %134 = vmatpush1.msra.mxu0 0.0
    %135 = vmatprep.subr.mxu0 0.0
    %136 = vmatpush1.msra.mxu0 0.0
    %137 = vmatprep.subr.mxu0 0.0
    %138 = vmatpush1.msra.mxu0 0.0
    %139 = vmatprep.subr.mxu0 0.0
    %140 = vmatpush1.msra.mxu0 0.0
    %141 = vmatprep.subr.mxu0 0.0
    %142 = vmatpush1.msra.mxu0 0.0
    %143 = vmatprep.subr.mxu0 0.0
    %144 = vmatpush1.msra.mxu0 0.0
    %145 = vmatprep.subr.mxu0 0.0
    %146 = vmatpush1.msra.mxu0 0.0
    %147 = vmatprep.subr.mxu0 0.0
    %148 = vmatpush1.msra.mxu0 %v115
    %149 = vmatprep.subr.mxu0 0.0
    %150 = vmatpush2.msra.mxu0 0.0
    %151 = vmatprep.subr.mxu0 0.0
    %152 = vmatpush2.msra.mxu0 0.0
    %153 = vmatprep.subr.mxu0 0.0
    %154 = vmatpush2.msra.mxu0 0.0
    %155 = vmatprep.subr.mxu0 0.0
    %156 = vmatpush2.msra.mxu0 0.0
    %157 = vmatprep.subr.mxu0 0.0
    %158 = vmatpush2.msra.mxu0 0.0
    %159 = vmatprep.subr.mxu0 0.0
    %160 = vmatpush2.msra.mxu0 0.0
    %161 = vmatprep.subr.mxu0 0.0
    %162 = vmatpush2.msra.mxu0 0.0
    %163 = vmatprep.subr.mxu0 0.0
    %164 = vmatpush2.msra.mxu0 0.0
    %165 = vmatprep.subr.mxu0 0.0
    %166 = vmatpush2.msra.mxu0 0.0
    %167 = vmatprep.subr.mxu0 0.0
    %168 = vmatpush2.msra.mxu0 0.0
    %169 = vmatprep.subr.mxu0 0.0
    %170 = vmatpush2.msra.mxu0 0.0
    %171 = vmatprep.subr.mxu0 0.0
    %172 = vmatpush2.msra.mxu0 0.0
    %173 = vmatprep.subr.mxu0 0.0
    %174 = vmatpush2.msra.mxu0 0.0
    %175 = vmatprep.subr.mxu0 0.0
    %176 = vmatpush2.msra.mxu0 0.0
    %177 = vmatprep.subr.mxu0 0.0
    %178 = vmatpush2.msra.mxu0 0.0
    %179 = vmatprep.subr.mxu0 0.0
    %180 = vmatpush2.msra.mxu0 0.0
    %181 = vmatprep.mubr.f32.mxu0 0.0
    %182 = vmatmul.mubr.f32.gmra.mxu0 %v111
    %v183 = vpop.f32.mrf.mxu0
    %v184 = vadd.f32 %v107, %v183
    %v185 = vpop.f32.mrf.mxu0
    %186 = vdwg.mxu0
    %v187 = vmax.f32 %v184, 0.0
    %v188 = vld [vmem:[%s5] sm:$0xff]
    %v189 = vld [vmem:[%s5 + $0x8] sm:$0xff]
    %v190 = vld [vmem:[%s5 + $0x10] sm:$0xf]
    %v191 = vld [vmem:[%s6] sm:$0x1]
    %v193 = vlaneseq
    %v194 = vshrl.u32 %v193, 7
    %v195 = vsub.s32 0, %v194
    %v196 = vrot.slane %v191, %v195
    %vm198 = vcmask 162816
    %v200 = vsel %vm198, %v187, 0
    %vm202 = vcmask 1043456
    %v204 = vsel %vm202, %v190, 0
    %206 = vmatprep.subr.mxu0 0.0
    %207 = vmatpush1.msra.mxu0 0.0
    %208 = vmatprep.subr.mxu0 0.0
    %209 = vmatpush1.msra.mxu0 0.0
    %210 = vmatprep.subr.mxu0 0.0
    %211 = vmatpush1.msra.mxu0 0.0
    %212 = vmatprep.subr.mxu0 0.0
    %213 = vmatpush1.msra.mxu0 0.0
    %214 = vmatprep.subr.mxu0 0.0
    %215 = vmatpush1.msra.mxu0 0.0
    %216 = vmatprep.subr.mxu0 0.0
    %217 = vmatpush1.msra.mxu0 0.0
    %218 = vmatprep.subr.mxu0 0.0
    %219 = vmatpush1.msra.mxu0 0.0
    %220 = vmatprep.subr.mxu0 0.0
    %221 = vmatpush1.msra.mxu0 0.0
    %222 = vmatprep.subr.mxu0 0.0
    %223 = vmatpush1.msra.mxu0 0.0
    %224 = vmatprep.subr.mxu0 0.0
    %225 = vmatpush1.msra.mxu0 0.0
    %226 = vmatprep.subr.mxu0 0.0
    %227 = vmatpush1.msra.mxu0 0.0
    %228 = vmatprep.subr.mxu0 0.0
    %229 = vmatpush1.msra.mxu0 0.0
    %230 = vmatprep.subr.mxu0 0.0
    %231 = vmatpush1.msra.mxu0 0.0
    %232 = vmatprep.subr.mxu0 0.0
    %233 = vmatpush1.msra.mxu0 %v204
    %234 = vmatprep.subr.mxu0 0.0
    %235 = vmatpush1.msra.mxu0 %v189
    %236 = vmatprep.subr.mxu0 0.0
    %237 = vmatpush1.msra.mxu0 %v188
    %238 = vmatprep.subr.mxu0 0.0
    %239 = vmatpush2.msra.mxu0 0.0
    %240 = vmatprep.subr.mxu0 0.0
    %241 = vmatpush2.msra.mxu0 0.0
    %242 = vmatprep.subr.mxu0 0.0
    %243 = vmatpush2.msra.mxu0 0.0
    %244 = vmatprep.subr.mxu0 0.0
    %245 = vmatpush2.msra.mxu0 0.0
    %246 = vmatprep.subr.mxu0 0.0
    %247 = vmatpush2.msra.mxu0 0.0
    %248 = vmatprep.subr.mxu0 0.0
    %249 = vmatpush2.msra.mxu0 0.0
    %250 = vmatprep.subr.mxu0 0.0
    %251 = vmatpush2.msra.mxu0 0.0
    %252 = vmatprep.subr.mxu0 0.0
    %253 = vmatpush2.msra.mxu0 0.0
    %254 = vmatprep.subr.mxu0 0.0
    %255 = vmatpush2.msra.mxu0 0.0
    %256 = vmatprep.subr.mxu0 0.0
    %257 = vmatpush2.msra.mxu0 0.0
    %258 = vmatprep.subr.mxu0 0.0
    %259 = vmatpush2.msra.mxu0 0.0
    %260 = vmatprep.subr.mxu0 0.0
    %261 = vmatpush2.msra.mxu0 0.0
    %262 = vmatprep.subr.mxu0 0.0
    %263 = vmatpush2.msra.mxu0 0.0
    %264 = vmatprep.subr.mxu0 0.0
    %265 = vmatpush2.msra.mxu0 0.0
    %266 = vmatprep.subr.mxu0 0.0
    %267 = vmatpush2.msra.mxu0 0.0
    %268 = vmatprep.subr.mxu0 0.0
    %269 = vmatpush2.msra.mxu0 0.0
    %270 = vmatprep.mubr.f32.mxu0 0.0
    %271 = vmatmul.mubr.f32.gmra.mxu0 %v200
    %v272 = vpop.f32.mrf.mxu0
    %v273 = vadd.f32 %v196, %v272
    %v274 = vpop.f32.mrf.mxu0
    %275 = vdwg.mxu0
    %v276 = vlaneseq
    %v277 = vshrl.u32 %v276, 7
    %v278 = vlaneseq
    %v279 = vand.u32 %v278, 127
    %s280 = smul.u32 0, 8
    %v281 = vstv %s280
    %v282 = vadd.s32 %v281, %v277
    %v283 = vmul.u32 %v282, 16
    %v284 = vadd.s32 %v283, %v279
    %s285 = sld [smem:[#allocation2]]
    %s286 = smul.u32 %s285, 2654435769
    %v287 = vstv %s286
    %v288 = vadd.s32 %v284, %v287
    %v289 = vshrl.u32 %v288, 16
    %v290 = vxor.u32 %v288, %v289
    %v291 = vmul.u32 %v290, 2246822507
    %v292 = vshrl.u32 %v291, 13
    %v293 = vxor.u32 %v291, %v292
    %v294 = vmul.u32 %v293, 3266489909
    %v295 = vshrl.u32 %v294, 16
    %v296 = vxor.u32 %v294, %v295
    %v297 = vshrl.u32 %v296, 8
    %vm298 = vcmp.ge.u32.totalorder %v297, 5033164
    %v299 = vmul.f32 %v273, 1.4285715
    %v300 = vsel %vm298, %v299, 0.0
    %vm301 = vcmask 130048
    %v302 = vsel %vm301, %v300, -inf
    %303 = vmax.xlane.f32.xlu0 %v302
    %v304 = vpop.xlane.xlu0 %303
    %v305 = vsub.f32 %v300, %v304
    %v306 = vmul.f32 %v305, 1.442695
    %v307 = vpow.pop %v306
    %v308 = vsel %vm301, %v307, 0.0
    %309 = vadd.xlane.f32.xlu0 %v308
    %v310 = vpop.xlane.xlu0 %309
    %v311 = vrcp.pop %v310
    %v312 = vmul.f32 %v307, %v311
    %v313 = vsel %vm301, %v312, 0.0
    %314 = vst [vmem:[#allocation3] sm:$0xff] %v313
    // Predicated region
    $region34: #{tpu_custom_call.1} parent=1 // pred_check
      _
    $region35: #{tpu_custom_call.1} parent=1 // pred_check_branch
      %316 = sbr.rel (0) target = $region37
    $region36: #{tpu_custom_call.1} parent=1 // pred_region
      %s318 = ssub.s32 128, 128
      %319 = vsyncadd [#allocation4], %s318
      %s321 = sshll.u32 [#allocation3], 4
      %s322 = int_to_ptr.vmem [resolvable:$true] %s321
      %324 = dma.vmem_to_hbm [thread:$0]  %s322, 128, %s8, [#allocation4]
    $region37: #{tpu_custom_call.1} parent=1 // pred_fallthru
      _
    // Predicated region
    $region38: #{tpu_custom_call.1} parent=1 // pred_check
      _
    $region39: #{tpu_custom_call.1} parent=1 // pred_check_branch
      %326 = sbr.rel (0) target = $region41
    $region40: #{tpu_custom_call.1} parent=1 // pred_region
      %327 = dma.done [#allocation4], 128
    $region41: #{tpu_custom_call.1} parent=1 // pred_fallthru
      _
    %328 = vsyncpa [#allocation4], 1

</llo_original>
